<compile_context>
chip_gen: v7x
topology: tpu7x:2x2x1
jax: 0.10.0
libtpu: 0.0.40
codegen_flags: <defaults>
</compile_context>

<pallas_src>
import functools

import jax
import jax.numpy as jnp
from jax.experimental import pallas as pl
from jax.experimental.pallas import tpu as pltpu


def _moments(x_f32, n, mask):
    """Per-channel mean and unbiased std over the last (spatial) axis.

    x_f32: (1, TC, HWpad) float32. Padded tail (if any) is zero, so the sum is
    already correct; `mask` zeroes the padded tail of the centered values for
    the variance. Two-pass (centered) form to match torch.std_mean numerics.
    """
    mean = jnp.sum(x_f32, axis=-1, keepdims=True) / n
    cent = x_f32 - mean
    if mask is not None:
        cent = cent * mask
    var = jnp.sum(cent * cent, axis=-1, keepdims=True) / (n - 1)
    return mean, jnp.sqrt(var)


def _adain_kernel(content_ref, style_ref, out_ref, *,
                  style_strength, eps, hw, hw_padded):
    # content_ref / style_ref / out_ref: (1, TC, HWpad) VMEM tiles.
    alpha = jnp.float32(style_strength)
    eps_f = jnp.float32(eps)
    n = hw  # real spatial size (static)

    if hw_padded != hw:
        lane = jax.lax.broadcasted_iota(jnp.int32, content_ref.shape, dimension=2)
        mask = (lane < hw).astype(jnp.float32)
    else:
        mask = None

    # Style: only its per-channel statistics are needed — no full-tile style
    # math afterwards, so the f32 view is not kept live past the reductions.
    s_mean, s_std = _moments(style_ref[...].astype(jnp.float32), n, mask)

    # Content: stats + one final FMA read.
    c = content_ref[...].astype(jnp.float32)
    c_mean, c_std = _moments(c, n, mask)

    # Per-channel affine coefficients (O(C) work, exact reciprocal is cheap).
    inv = pl.reciprocal(c_std + eps_f, approx=False)   # (1, TC, 1)
    scale = s_std * inv
    a = (1.0 - alpha) + alpha * scale
    b = alpha * (s_mean - c_mean * scale)

    # Single FMA per element.
    out_ref[...] = (a * c + b).astype(out_ref.dtype)


def _round_up(x, m):
    return ((x + m - 1) // m) * m


def adain(content, style, style_strength=1.0, eps=1e-5):
    """AdaIN forward. content, style: (B, C, H, W) arrays of the same shape."""
    assert content.shape == style.shape, "content and style must share shape"
    b, c, h, w = content.shape
    hw = h * w
    assert hw > 1, "unbiased std (ddof=1) requires H*W > 1"

    # Lane-dense spatial axis: pad HW up to a multiple of 128 so every vst is
    # unmasked; padded tail is zero and masked out of the statistics.
    hw_padded = _round_up(hw, 128)

    content_flat = content.reshape(b, c, hw)
    style_flat = style.reshape(b, c, hw)
    if hw_padded != hw:
        pad = ((0, 0), (0, 0), (0, hw_padded - hw))
        content_flat = jnp.pad(content_flat, pad)
        style_flat = jnp.pad(style_flat, pad)

    # Channel tile: target ~4 MiB per buffer so 3 arrays x 2 pipeline buffers
    # stay ~24 MiB — comfortably under the 48 MiB scoped-VMEM limit set below
    # (fits v7x's 64 MiB physical VMEM, v5e/v6e trivially). Channels split
    # freely since the reduction is only over HW.
    itemsize = jnp.dtype(content.dtype).itemsize
    target_block_bytes = 4 * 1024 * 1024
    tc = max(8, (target_block_bytes // max(1, hw_padded * itemsize)) // 8 * 8)
    if tc >= c:
        tc = c  # full channel dim — always a legal block dim
    num_c_tiles = pl.cdiv(c, tc)

    kernel = functools.partial(
        _adain_kernel,
        style_strength=float(style_strength),
        eps=float(eps),
        hw=hw,
        hw_padded=hw_padded,
    )

    out_flat = pl.pallas_call(
        kernel,
        out_shape=jax.ShapeDtypeStruct((b, c, hw_padded), content.dtype),
        grid_spec=pltpu.PrefetchScalarGridSpec(
            num_scalar_prefetch=0,
            grid=(b, num_c_tiles),
            in_specs=[
                pl.BlockSpec((1, tc, hw_padded), lambda i, j: (i, j, 0)),
                pl.BlockSpec((1, tc, hw_padded), lambda i, j: (i, j, 0)),
            ],
            out_specs=pl.BlockSpec((1, tc, hw_padded), lambda i, j: (i, j, 0)),
        ),
        compiler_params=pltpu.CompilerParams(
            dimension_semantics=("parallel", "parallel"),
            vmem_limit_bytes=48 * 1024 * 1024,
        ),
    )(content_flat, style_flat)

    if hw_padded != hw:
        out_flat = out_flat[:, :, :hw]
    return out_flat.reshape(b, c, h, w)


def _adain_ref(content, style, style_strength=1.0, eps=1e-5):
    """Pure-JAX reference matching the PyTorch module."""
    b, c, h, w = content.shape
    cf = content.reshape(b, c, -1)
    sf = style.reshape(b, c, -1)
    c_mean = jnp.mean(cf, axis=2, keepdims=True)
    c_std = jnp.std(cf, axis=2, keepdims=True, ddof=1)
    s_mean = jnp.mean(sf, axis=2, keepdims=True)
    s_std = jnp.std(sf, axis=2, keepdims=True, ddof=1)
    normalized = (cf - c_mean) / (c_std + eps)
    stylized = (normalized * s_std + s_mean).reshape(b, c, h, w)
    return (1.0 - style_strength) * content + style_strength * stylized


if __name__ == "__main__":
    key = jax.random.PRNGKey(0)
    k1, k2, k3, k4 = jax.random.split(key, 4)

    # Case 1: HW already a multiple of 128 (no padding path).
    b, c, h, w = 2, 4, 16, 16
    content = jax.random.normal(k1, (b, c, h, w), dtype=jnp.float32)
    style = jax.random.normal(k2, (b, c, h, w), dtype=jnp.float32) * 2.0 + 0.5

    out = adain(content, style, style_strength=0.7, eps=1e-5)
    out = jax.block_until_ready(out)
    ref = _adain_ref(content, style, style_strength=0.7, eps=1e-5)
    assert out.shape == (b, c, h, w)
    assert jnp.allclose(out, ref, atol=1e-4, rtol=1e-4), "mismatch vs reference (case 1)"

    # Case 2: ragged HW (10*10=100 -> padded to 128, masked statistics).
    b2, c2, h2, w2 = 2, 4, 10, 10
    content2 = jax.random.normal(k3, (b2, c2, h2, w2), dtype=jnp.float32)
    style2 = jax.random.normal(k4, (b2, c2, h2, w2), dtype=jnp.float32) * 1.5 - 0.3

    out2 = adain(content2, style2, style_strength=1.0, eps=1e-5)
    out2 = jax.block_until_ready(out2)
    ref2 = _adain_ref(content2, style2, style_strength=1.0, eps=1e-5)
    assert out2.shape == (b2, c2, h2, w2)
    assert jnp.allclose(out2, ref2, atol=1e-4, rtol=1e-4), "mismatch vs reference (case 2)"

    print("KERNEL_OK")
</pallas_src>

<mosaic_0001>
module attributes {stable_mosaic.version = 11 : i64} {
  func.func @_adain_kernel(%arg0: i32, %arg1: i32, %arg2: memref<1x4x256xf32, #tpu.memory_space<vmem>>, %arg3: memref<1x4x256xf32, #tpu.memory_space<vmem>>, %arg4: memref<1x4x256xf32, #tpu.memory_space<vmem>>) attributes {dimension_semantics = [#tpu.dimension_semantics<parallel>, #tpu.dimension_semantics<parallel>], iteration_bounds = array<i64: 2, 1>, scalar_prefetch = 0 : i64, scratch_operands = 0 : i64, tpu.core_type = #tpu.core_type<tc>, window_params = [{transform_indices = @transform_0, window_bounds = array<i64: 1, 4, 256>}, {transform_indices = @transform_1, window_bounds = array<i64: 1, 4, 256>}, {transform_indices = @transform_2, window_bounds = array<i64: 1, 4, 256>}]} {
    %c0 = arith.constant 0 : index
    %c0_0 = arith.constant 0 : index
    %c0_1 = arith.constant 0 : index
    %0 = vector.load %arg3[%c0, %c0_0, %c0_1] : memref<1x4x256xf32, #tpu.memory_space<vmem>>, vector<1x4x256xf32>
    %cst = arith.constant dense<0.000000e+00> : vector<1x4xf32>
    %1 = vector.multi_reduction <add>, %0, %cst [2] : vector<1x4x256xf32> to vector<1x4xf32>
    %2 = vector.shape_cast %1 : vector<1x4xf32> to vector<1x4x1xf32>
    %cst_2 = arith.constant 2.560000e+02 : f32
    %3 = vector.broadcast %cst_2 : f32 to vector<1x4x1xf32>
    %4 = arith.divf %2, %3 : vector<1x4x1xf32>
    %5 = vector.broadcast %4 : vector<1x4x1xf32> to vector<1x4x256xf32>
    %6 = arith.subf %0, %5 : vector<1x4x256xf32>
    %7 = arith.mulf %6, %6 : vector<1x4x256xf32>
    %cst_3 = arith.constant dense<0.000000e+00> : vector<1x4xf32>
    %8 = vector.multi_reduction <add>, %7, %cst_3 [2] : vector<1x4x256xf32> to vector<1x4xf32>
    %9 = vector.shape_cast %8 : vector<1x4xf32> to vector<1x4x1xf32>
    %cst_4 = arith.constant 2.550000e+02 : f32
    %10 = vector.broadcast %cst_4 : f32 to vector<1x4x1xf32>
    %11 = arith.divf %9, %10 : vector<1x4x1xf32>
    %12 = math.sqrt %11 : vector<1x4x1xf32>
    %c0_5 = arith.constant 0 : index
    %c0_6 = arith.constant 0 : index
    %c0_7 = arith.constant 0 : index
    %13 = vector.load %arg2[%c0_5, %c0_6, %c0_7] : memref<1x4x256xf32, #tpu.memory_space<vmem>>, vector<1x4x256xf32>
    %cst_8 = arith.constant dense<0.000000e+00> : vector<1x4xf32>
    %14 = vector.multi_reduction <add>, %13, %cst_8 [2] : vector<1x4x256xf32> to vector<1x4xf32>
    %15 = vector.shape_cast %14 : vector<1x4xf32> to vector<1x4x1xf32>
    %cst_9 = arith.constant 2.560000e+02 : f32
    %16 = vector.broadcast %cst_9 : f32 to vector<1x4x1xf32>
    %17 = arith.divf %15, %16 : vector<1x4x1xf32>
    %18 = vector.broadcast %17 : vector<1x4x1xf32> to vector<1x4x256xf32>
    %19 = arith.subf %13, %18 : vector<1x4x256xf32>
    %20 = arith.mulf %19, %19 : vector<1x4x256xf32>
    %cst_10 = arith.constant dense<0.000000e+00> : vector<1x4xf32>
    %21 = vector.multi_reduction <add>, %20, %cst_10 [2] : vector<1x4x256xf32> to vector<1x4xf32>
    %22 = vector.shape_cast %21 : vector<1x4xf32> to vector<1x4x1xf32>
    %cst_11 = arith.constant 2.550000e+02 : f32
    %23 = vector.broadcast %cst_11 : f32 to vector<1x4x1xf32>
    %24 = arith.divf %22, %23 : vector<1x4x1xf32>
    %25 = math.sqrt %24 : vector<1x4x1xf32>
    %cst_12 = arith.constant 9.99999974E-6 : f32
    %26 = vector.broadcast %cst_12 : f32 to vector<1x4x1xf32>
    %27 = arith.addf %25, %26 : vector<1x4x1xf32>
    %28 = tpu.reciprocal %27 : vector<1x4x1xf32> -> vector<1x4x1xf32>
    %29 = arith.mulf %12, %28 : vector<1x4x1xf32>
    %cst_13 = arith.constant 1.000000e+00 : f32
    %cst_14 = arith.constant 0.699999988 : f32
    %30 = arith.subf %cst_13, %cst_14 : f32
    %cst_15 = arith.constant 0.699999988 : f32
    %31 = vector.broadcast %cst_15 : f32 to vector<1x4x1xf32>
    %32 = arith.mulf %31, %29 : vector<1x4x1xf32>
    %33 = vector.broadcast %30 : f32 to vector<1x4x1xf32>
    %34 = arith.addf %33, %32 : vector<1x4x1xf32>
    %35 = arith.mulf %17, %29 : vector<1x4x1xf32>
    %36 = arith.subf %4, %35 : vector<1x4x1xf32>
    %cst_16 = arith.constant 0.699999988 : f32
    %37 = vector.broadcast %cst_16 : f32 to vector<1x4x1xf32>
    %38 = arith.mulf %37, %36 : vector<1x4x1xf32>
    %39 = vector.broadcast %34 : vector<1x4x1xf32> to vector<1x4x256xf32>
    %40 = arith.mulf %39, %13 : vector<1x4x256xf32>
    %41 = vector.broadcast %38 : vector<1x4x1xf32> to vector<1x4x256xf32>
    %42 = arith.addf %40, %41 : vector<1x4x256xf32>
    %c0_17 = arith.constant 0 : index
    %c0_18 = arith.constant 0 : index
    %c0_19 = arith.constant 0 : index
    %43 = vector.load %arg4[%c0_17, %c0_18, %c0_19] : memref<1x4x256xf32, #tpu.memory_space<vmem>>, vector<1x4x256xf32>
    tpu.vector_store %arg4[%c0_17, %c0_18, %c0_19], %42 {strides = array<i32>} : memref<1x4x256xf32, #tpu.memory_space<vmem>>, vector<1x4x256xf32>,
    return
  }
  func.func @transform_0(%arg0: i32, %arg1: i32) -> (i32, i32, i32) {
    %c0_i32 = arith.constant 0 : i32
    %c0_i32_0 = arith.constant 0 : i32
    return %arg0, %arg1, %c0_i32 : i32, i32, i32
  }
  func.func @transform_1(%arg0: i32, %arg1: i32) -> (i32, i32, i32) {
    %c0_i32 = arith.constant 0 : i32
    %c0_i32_0 = arith.constant 0 : i32
    return %arg0, %arg1, %c0_i32 : i32, i32, i32
  }
  func.func @transform_2(%arg0: i32, %arg1: i32) -> (i32, i32, i32) {
    %c0_i32 = arith.constant 0 : i32
    %c0_i32_0 = arith.constant 0 : i32
    return %arg0, %arg1, %c0_i32 : i32, i32, i32
  }
}

</mosaic_0001>

<llo_original>
// kernel: tpu_custom_call.1
$region0: #{tpu_custom_call.1}
  #allocation0 [shape = 'u32[]', space=smem, size = 0x4, offset = 0x4, fixed_abs, tag = 'smem constant byte address 0x4 - core index']
  #allocation1 [shape = 'u32[144,128]{1,0:T(1,128)}', space=vmem, size = 0x12000, scoped, tag = 'internal scratch']
  %s0 = inlined_call_operand.hbm [shape: f32[2,4,256], index: 0, kind: input, shape index: {}]
  %s1 = inlined_call_operand.hbm [shape: f32[2,4,256], index: 1, kind: input, shape index: {}]
  %s2 = inlined_call_operand.hbm [shape: f32[2,4,256], index: 2, kind: output, shape index: {}]
  %s3 = sld [smem:[#allocation0]]
  $region49: #{tpu_custom_call.1} parent=0
    _
  %s5 = ssub.s32 1, %s3
  %s6 = scalar_select 0, %s5, %s3
  $region1: #{tpu_custom_call.1} parent=0
    #allocation2 [shape = 'u8[8192]{0}', space=vmem, size = 0x2000, scoped, tag = 'input window, operand 0']
    #allocation3 [shape = 's32[2]{0}', space=sflag, size = 0x8, scoped, tag = 'scoped memory for tpu_custom_call.1']
    #allocation4 [shape = 's32[2]{0}', space=sflag, size = 0x8, scoped, tag = 'scoped memory for tpu_custom_call.1']
    #allocation5 [shape = 'u8[8192]{0}', space=vmem, size = 0x2000, scoped, tag = 'input window, operand 1']
    #allocation6 [shape = 's32[2]{0}', space=sflag, size = 0x8, scoped, tag = 'scoped memory for tpu_custom_call.1']
    #allocation7 [shape = 'u8[8192]{0}', space=vmem, size = 0x2000, scoped, tag = 'output window, operand 0']
    %7 = vsyncpa [#allocation3], 0
    %s8 = scalar_lea.sflag [#allocation3], 1
    %9 = vsyncpa %s8, 0
    %10 = vsyncpa [#allocation6], 0
    %s11 = scalar_lea.sflag [#allocation6], 1
    %12 = vsyncpa %s11, 0
    %13 = vsyncpa [#allocation4], 0
    %s14 = scalar_lea.sflag [#allocation4], 1
    %15 = vsyncpa %s14, 0
    loop: start=0, step=1, limit=4
    $region2: #{tpu_custom_call.1} parent=1 // loop_pre_header
      _
    $region3: #{tpu_custom_call.1} parent=1 // loop_header
      %s17 = sphi 0, %s21
      %p18 = scmp.ge.s32.totalorder %s17, 4
      %s24 = sphi 0, %s36
      %s25 = sphi 0, %s32
      %s26 = sphi 0, %s24
      %s27 = sphi 0, %s25
      %s28 = sphi 0, %s26
      %s29 = sphi 0, %s27
      %s41 = sphi 0, %s43
      %s44 = sphi 0, %s41
      %s45 = sphi 0, %s44
      %s61 = sphi 0, %s45
      %s69 = sphi 0, %s71
      %s72 = sphi 0, %s69
      %s73 = sphi 0, %s72
      %s89 = sphi 0, %s73
      %s97 = sphi 0, %s99
      %s100 = sphi 0, %s97
      %s101 = sphi 0, %s100
      %s117 = sphi 0, %s101
    $region4: #{tpu_custom_call.1} parent=1 // loop_header_branch
      %20 = sbr.rel (%p18) target = $region8
    $region5: #{tpu_custom_call.1} parent=1 // loop_body
      %s22 = ssub.s32 %s17, 1
      %s23 = ssub.s32 %s17, 2
      %s30 = sadd.s32 1, %s25
      %p31 = scmp.ge.s32.totalorder %s30, 1
      %s32 = scalar_select %p31, 0, %s30
      %s33 = sadd.s32 1, %s24
      %s34 = scalar_select %p31, %s33, %s24
      %p35 = scmp.ge.s32.totalorder %s34, 2
      %s36 = scalar_select %p35, 0, %s34
      %s37 = ssub.s32 %s24, %s36
      %s38 = ssub.s32 %s25, %s32
      %s39 = sor.u32 %s37, %s38
      %p40 = scmp.eq.s32.totalorder %s39, 0
      %s42 = sadd.s32 %s41, 1
      %s43 = scalar_select %p40, %s41, %s42
      %p46 = pneg %p40
      %p47 = scmp.eq.s32.totalorder %s17, 1
      %p48 = por %p46, %p47
      %p49 = scmp.ne.s32.totalorder %s41, %s44
      %p50 = scmp.eq.s32.totalorder %s17, 0
      %p51 = por %p49, %p50
      %p52 = scmp.ne.s32.totalorder %s41, %s44
      %p53 = scmp.eq.s32.totalorder %s22, 1
      %p54 = por %p52, %p53
      %p55 = scmp.ne.s32.totalorder %s44, %s45
      %p56 = scmp.eq.s32.totalorder %s22, 0
      %p57 = por %p55, %p56
      %p58 = scmp.ne.s32.totalorder %s44, %s45
      %p59 = scmp.eq.s32.totalorder %s23, 1
      %p60 = por %p58, %p59
      %p62 = scmp.ne.s32.totalorder %s45, %s61
      %p63 = scmp.eq.s32.totalorder %s23, 0
      %p64 = por %p62, %p63
      %s65 = ssub.s32 %s24, %s36
      %s66 = ssub.s32 %s25, %s32
      %s67 = sor.u32 %s65, %s66
      %p68 = scmp.eq.s32.totalorder %s67, 0
      %s70 = sadd.s32 %s69, 1
      %s71 = scalar_select %p68, %s69, %s70
      %p74 = pneg %p68
      %p75 = scmp.eq.s32.totalorder %s17, 1
      %p76 = por %p74, %p75
      %p77 = scmp.ne.s32.totalorder %s69, %s72
      %p78 = scmp.eq.s32.totalorder %s17, 0
      %p79 = por %p77, %p78
      %p80 = scmp.ne.s32.totalorder %s69, %s72
      %p81 = scmp.eq.s32.totalorder %s22, 1
      %p82 = por %p80, %p81
      %p83 = scmp.ne.s32.totalorder %s72, %s73
      %p84 = scmp.eq.s32.totalorder %s22, 0
      %p85 = por %p83, %p84
      %p86 = scmp.ne.s32.totalorder %s72, %s73
      %p87 = scmp.eq.s32.totalorder %s23, 1
      %p88 = por %p86, %p87
      %p90 = scmp.ne.s32.totalorder %s73, %s89
      %p91 = scmp.eq.s32.totalorder %s23, 0
      %p92 = por %p90, %p91
      %s93 = ssub.s32 %s24, %s36
      %s94 = ssub.s32 %s25, %s32
      %s95 = sor.u32 %s93, %s94
      %p96 = scmp.eq.s32.totalorder %s95, 0
      %s98 = sadd.s32 %s97, 1
      %s99 = scalar_select %p96, %s97, %s98
      %p102 = pneg %p96
      %p103 = scmp.eq.s32.totalorder %s17, 1
      %p104 = por %p102, %p103
      %p105 = scmp.ne.s32.totalorder %s97, %s100
      %p106 = scmp.eq.s32.totalorder %s17, 0
      %p107 = por %p105, %p106
      %p108 = scmp.ne.s32.totalorder %s97, %s100
      %p109 = scmp.eq.s32.totalorder %s22, 1
      %p110 = por %p108, %p109
      %p111 = scmp.ne.s32.totalorder %s100, %s101
      %p112 = scmp.eq.s32.totalorder %s22, 0
      %p113 = por %p111, %p112
      %p114 = scmp.ne.s32.totalorder %s100, %s101
      %p115 = scmp.eq.s32.totalorder %s23, 1
      %p116 = por %p114, %p115
      %p118 = scmp.ne.s32.totalorder %s101, %s117
      %p119 = scmp.eq.s32.totalorder %s23, 0
      %p120 = por %p118, %p119
      %p121 = scmp.le.s32.totalorder 1, %s17
      %p122 = scmp.lt.s32.totalorder %s17, 3
      %p123 = pnand %p121, %p122
      %p124 = pneg %p123
      // Predicated region
      $region9: #{tpu_custom_call.1} parent=5 // pred_check
        _
      $region10: #{tpu_custom_call.1} parent=5 // pred_check_branch
        %126 = sbr.rel (%p123) target = $region12
      $region11: #{tpu_custom_call.1} parent=5 // pred_region
        %s127 = ssub.s32 %s17, 1
      $region12: #{tpu_custom_call.1} parent=5 // pred_fallthru
        _
      %p128 = scmp.lt.s32.totalorder %s17, 2
      // Predicated region
      $region13: #{tpu_custom_call.1} parent=5 // pred_check
        %p129 = pneg %p128
      $region14: #{tpu_custom_call.1} parent=5 // pred_check_branch
        %131 = sbr.rel (%p129) target = $region16
      $region15: #{tpu_custom_call.1} parent=5 // pred_region
        // Predicated region
        $region17: #{tpu_custom_call.1} parent=15 // pred_check
          %p132 = pneg %p51
        $region18: #{tpu_custom_call.1} parent=15 // pred_check_branch
          %134 = sbr.rel (%p132) target = $region20
        $region19: #{tpu_custom_call.1} parent=15 // pred_region
          %s135 = sand.u32 %s41, 1
          %s136 = scalar_lea.sflag [#allocation3], %s135
          %s137 = sand.u32 %s41, 1
          %s138 = smul.addr %s137, 8
          %s139 = scalar_lea.vmem [#allocation2], %s138
          %s141 = ssub.s32 128, 128
          %142 = vsyncadd %s136, %s141
          %s143 = smul.addr %s25, 2
          %s144 = smul.addr %s24, 2
          %s145 = sadd.s32 %s143, %s144
          %s146 = smul.addr %s145, 64
          %s147 = scalar_lea.hbm %s0, %s146
          %s149 = sshll.u32 %s139, 4
          %s150 = int_to_ptr.vmem [resolvable:$true] %s149
          %152 = dma.hbm_to_vmem [thread:$0]  %s147, 128, %s150, %s136
        $region20: #{tpu_custom_call.1} parent=15 // pred_fallthru
          _
        // Predicated region
        $region21: #{tpu_custom_call.1} parent=15 // pred_check
          %p153 = pneg %p79
        $region22: #{tpu_custom_call.1} parent=15 // pred_check_branch
          %155 = sbr.rel (%p153) target = $region24
        $region23: #{tpu_custom_call.1} parent=15 // pred_region
          %s156 = sand.u32 %s69, 1
          %s157 = scalar_lea.sflag [#allocation6], %s156
          %s158 = sand.u32 %s69, 1
          %s159 = smul.addr %s158, 8
          %s160 = scalar_lea.vmem [#allocation5], %s159
          %s162 = ssub.s32 128, 128
          %163 = vsyncadd %s157, %s162
          %s164 = smul.addr %s25, 2
          %s165 = smul.addr %s24, 2
          %s166 = sadd.s32 %s164, %s165
          %s167 = smul.addr %s166, 64
          %s168 = scalar_lea.hbm %s1, %s167
          %s170 = sshll.u32 %s160, 4
          %s171 = int_to_ptr.vmem [resolvable:$true] %s170
          %173 = dma.hbm_to_vmem [thread:$0]  %s168, 128, %s171, %s157
        $region24: #{tpu_custom_call.1} parent=15 // pred_fallthru
          _
      $region16: #{tpu_custom_call.1} parent=5 // pred_fallthru
        _
      %p174 = scmp.le.s32.totalorder 1, %s17
      %p175 = scmp.lt.s32.totalorder %s17, 3
      %p176 = pnand %p174, %p175
      %p177 = pneg %p176
      // Predicated region
      $region25: #{tpu_custom_call.1} parent=5 // pred_check
        _
      $region26: #{tpu_custom_call.1} parent=5 // pred_check_branch
        %179 = sbr.rel (%p176) target = $region28
      $region27: #{tpu_custom_call.1} parent=5 // pred_region
        %s180 = ssub.s32 %s17, 1
        %s181 = sand.u32 %s44, 1
        %s182 = scalar_lea.sflag [#allocation3], %s181
        %s183 = sand.u32 %s44, 1
        %s184 = smul.addr %s183, 8
        %s185 = scalar_lea.vmem [#allocation2], %s184
        // Predicated region
        $region29: #{tpu_custom_call.1} parent=27 // pred_check
          %p186 = pneg %p57
        $region30: #{tpu_custom_call.1} parent=27 // pred_check_branch
          %188 = sbr.rel (%p186) target = $region32
        $region31: #{tpu_custom_call.1} parent=27 // pred_region
          %189 = dma.done %s182, 128
        $region32: #{tpu_custom_call.1} parent=27 // pred_fallthru
          _
        %s190 = sand.u32 %s72, 1
        %s191 = scalar_lea.sflag [#allocation6], %s190
        %s192 = sand.u32 %s72, 1
        %s193 = smul.addr %s192, 8
        %s194 = scalar_lea.vmem [#allocation5], %s193
        // Predicated region
        $region33: #{tpu_custom_call.1} parent=27 // pred_check
          %p195 = pneg %p85
        $region34: #{tpu_custom_call.1} parent=27 // pred_check_branch
          %197 = sbr.rel (%p195) target = $region36
        $region35: #{tpu_custom_call.1} parent=27 // pred_region
          %198 = dma.done %s191, 128
        $region36: #{tpu_custom_call.1} parent=27 // pred_fallthru
          _
        %s199 = sand.u32 %s44, 1
        %s200 = scalar_lea.sflag [#allocation3], %s199
        %s201 = sand.u32 %s44, 1
        %s202 = smul.addr %s201, 8
        %s203 = scalar_lea.vmem [#allocation2], %s202
        %p204 = pneg %p57
        %p205 = pneg %p54
        %s206 = sand.u32 %s72, 1
        %s207 = scalar_lea.sflag [#allocation6], %s206
        %s208 = sand.u32 %s72, 1
        %s209 = smul.addr %s208, 8
        %s210 = scalar_lea.vmem [#allocation5], %s209
        %p211 = pneg %p85
        %p212 = pneg %p82
        %p213 = pneg %p113
        %p214 = pneg %p110
        %s215 = sand.u32 %s100, 1
        %s216 = scalar_lea.sflag [#allocation4], %s215
        %s217 = sand.u32 %s100, 1
        %s218 = smul.addr %s217, 8
        %s219 = scalar_lea.vmem [#allocation7], %s218
        %v220 = vld [vmem:[%s194] sm:$0xff]
        %v222 = vcombine.high %v220, %v220
        %vm224 = vcmask 1043456
        %v225 = vsel %vm224, %v220, 0.0
        %v226 = vsel %vm224, %v222, 0.0
        %v227 = vadd.f32 %v225, %v226
        %228 = vadd.xlane.f32.xlu0 %v227
        %v229 = vpop.xlane.xlu0 %228
        %v230 = vrcp.pop 256.0
        %v231 = vmul.f32 %v229, %v230
        %v234 = vunpack.c.l.s4 839922192
        %v235 = vunpack.c.0.s8 %v234
        %v236 = vlaneseq
        %v237 = vshrl.u32 %v236, 7
        %v238 = vsub.s32 %v235, %v237
        %v239 = vrot.slane %v231, %v238
        %v241 = vsub.f32 %v220, %v239
        %v242 = vmul.f32 %v241, %v241
        %v244 = vcombine.high %v242, %v242
        %v246 = vsel %vm224, %v242, 0.0
        %v247 = vsel %vm224, %v244, 0.0
        %v248 = vadd.f32 %v246, %v247
        %249 = vadd.xlane.f32.xlu0 %v248
        %v250 = vpop.xlane.xlu0 %249
        %v251 = vrcp.pop 255.0
        %v252 = vmul.f32 %v250, %v251
        %v253 = vrsqrt.pop %v252
        %v254 = vmul.f32 %v252, %v253
        %vm255 = vcmp.eq.f32.partialorder %v252, inf
        %v256 = vsel %vm255, %v252, %v254
        %vm257 = vcmp.eq.f32.partialorder %v252, 0.0
        %v258 = vand.u32 %v252, 2147483648
        %v259 = vsel %vm257, %v258, %v256
        %v260 = vld [vmem:[%s185] sm:$0xff]
        %v262 = vcombine.high %v260, %v260
        %v264 = vsel %vm224, %v260, 0.0
        %v265 = vsel %vm224, %v262, 0.0
        %v266 = vadd.f32 %v264, %v265
        %267 = vadd.xlane.f32.xlu0 %v266
        %v268 = vpop.xlane.xlu0 %267
        %v269 = vmul.f32 %v268, %v230
        %v272 = vunpack.c.l.s4 839922192
        %v273 = vunpack.c.0.s8 %v272
        %v274 = vlaneseq
        %v275 = vshrl.u32 %v274, 7
        %v276 = vsub.s32 %v273, %v275
        %v277 = vrot.slane %v269, %v276
        %v279 = vsub.f32 %v260, %v277
        %v280 = vmul.f32 %v279, %v279
        %v282 = vcombine.high %v280, %v280
        %v284 = vsel %vm224, %v280, 0.0
        %v285 = vsel %vm224, %v282, 0.0
        %v286 = vadd.f32 %v284, %v285
        %287 = vadd.xlane.f32.xlu0 %v286
        %v288 = vpop.xlane.xlu0 %287
        %v289 = vmul.f32 %v288, %v251
        %v290 = vrsqrt.pop %v289
        %v291 = vmul.f32 %v289, %v290
        %vm292 = vcmp.eq.f32.partialorder %v289, inf
        %v293 = vsel %vm292, %v289, %v291
        %vm294 = vcmp.eq.f32.partialorder %v289, 0.0
        %v295 = vand.u32 %v289, 2147483648
        %v296 = vsel %vm294, %v295, %v293
        %v297 = vadd.f32 %v296, 1e-05
        %v298 = vrcp.pop %v297
        %v299 = vmul.f32 %v259, %v298
        %v300 = vmul.f32 %v299, 0.7
        %v301 = vadd.f32 %v300, 0.3
        %v302 = vmul.f32 %v269, %v299
        %v303 = vsub.f32 %v231, %v302
        %v304 = vmul.f32 %v303, 0.7
        %v305 = vmul.f32 %v301, %v260
        %v306 = vmul.f32 %v301, %v262
        %v307 = vadd.f32 %v305, %v304
        %v308 = vadd.f32 %v306, %v304
        %v311 = vcombine.low %v307, %v308
        %313 = vst [vmem:[%s219] sm:$0xff] %v311
        %s314 = sand.u32 %s100, 1
        %s315 = scalar_lea.sflag [#allocation4], %s314
        %s316 = sand.u32 %s100, 1
        %s317 = smul.addr %s316, 8
        %s318 = scalar_lea.vmem [#allocation7], %s317
        // Predicated region
        $region37: #{tpu_custom_call.1} parent=27 // pred_check
          %p319 = pneg %p110
        $region38: #{tpu_custom_call.1} parent=27 // pred_check_branch
          %321 = sbr.rel (%p319) target = $region40
        $region39: #{tpu_custom_call.1} parent=27 // pred_region
          %s323 = ssub.s32 128, 128
          %324 = vsyncadd %s315, %s323
          %s325 = smul.addr %s27, 2
          %s326 = smul.addr %s26, 2
          %s327 = sadd.s32 %s325, %s326
          %s328 = smul.addr %s327, 64
          %s329 = scalar_lea.hbm %s2, %s328
          %s331 = sshll.u32 %s318, 4
          %s332 = int_to_ptr.vmem [resolvable:$true] %s331
          %334 = dma.vmem_to_hbm [thread:$0]  %s332, 128, %s329, %s315
        $region40: #{tpu_custom_call.1} parent=27 // pred_fallthru
          _
      $region28: #{tpu_custom_call.1} parent=5 // pred_fallthru
        _
      %p335 = scmp.le.s32.totalorder 2, %s17
      // Predicated region
      $region41: #{tpu_custom_call.1} parent=5 // pred_check
        %p336 = pneg %p335
      $region42: #{tpu_custom_call.1} parent=5 // pred_check_branch
        %338 = sbr.rel (%p336) target = $region44
      $region43: #{tpu_custom_call.1} parent=5 // pred_region
        %s339 = ssub.s32 %s17, 2
        // Predicated region
        $region45: #{tpu_custom_call.1} parent=43 // pred_check
          %p340 = pneg %p116
        $region46: #{tpu_custom_call.1} parent=43 // pred_check_branch
          %342 = sbr.rel (%p340) target = $region48
        $region47: #{tpu_custom_call.1} parent=43 // pred_region
          %s343 = sand.u32 %s101, 1
          %s344 = scalar_lea.sflag [#allocation4], %s343
          %s345 = sand.u32 %s101, 1
          %s346 = smul.addr %s345, 8
          %s347 = scalar_lea.vmem [#allocation7], %s346
          %348 = dma.done %s344, 128
        $region48: #{tpu_custom_call.1} parent=43 // pred_fallthru
          _
      $region44: #{tpu_custom_call.1} parent=5 // pred_fallthru
        _
    $region6: #{tpu_custom_call.1} parent=1 // loop_footer
      %s21 = sadd.s32 1, %s17
    $region7: #{tpu_custom_call.1} parent=1 // loop_footer_branch
      %16 = sbr.rel target = $region3
    $region8: #{tpu_custom_call.1} parent=1 // loop_exit
      _
    %349 = vsyncpa [#allocation3], 1
    %s350 = scalar_lea.sflag [#allocation3], 1
    %351 = vsyncpa %s350, 1
    %352 = vsyncpa [#allocation6], 1
    %s353 = scalar_lea.sflag [#allocation6], 1
    %354 = vsyncpa %s353, 1
    %355 = vsyncpa [#allocation4], 1
    %s356 = scalar_lea.sflag [#allocation4], 1
    %357 = vsyncpa %s356, 1

</llo_original>
